<compile_context>
chip_gen: v5e
topology: v5e:2x2
jax: 0.10.0
libtpu: 0.0.40
codegen_flags: <defaults>
</compile_context>

<pallas_src>
import functools
import math

import jax
import jax.numpy as jnp
from jax import lax
from jax.experimental import pallas as pl
from jax.experimental.pallas import tpu as pltpu

LANE = 128
SUBLANE = 8


def _round_up(x, m):
    return (x + m - 1) // m * m


def _gelu(x, mode):
    if mode == "exact":
        # PyTorch nn.GELU() default = exact erf GELU.
        return 0.5 * x * (1.0 + lax.erf(x * (1.0 / math.sqrt(2.0))))
    if mode == "tanh":
        # tanh approximation: transcendental runs on the EUP slot.
        c = math.sqrt(2.0 / math.pi)
        return 0.5 * x * (1.0 + jnp.tanh(c * (x + 0.044715 * (x * x * x))))
    if mode == "sigmoid":
        # x * sigmoid(1.702 x): exp on EUP, minimal VALU filler.
        return x * jax.nn.sigmoid(1.702 * x)
    raise ValueError(f"unknown gelu mode: {mode}")


def fourier_mlp_kernel(
    x_ref,                            # (TB, d_in+1) f32  -- last column is cond
    coeff_ref, phase_ref,             # (1, C) f32
    w_t1_ref, b_t1_ref,               # (2C, C) mxu, (1, C) f32   timestep_embed[0]
    w_t2_ref, w_in_ref, b_embed_ref,  # (C, C) mxu, (d_in, C) mxu, (1, C) f32
    w_l0_ref, b_l0_ref,               # (C, C) mxu, (1, C) f32
    w_l1_ref, b_l1_ref,               # (C, C) mxu, (1, C) f32
    w_out_ref, b_out_ref,             # (C, Dout_pad) mxu, (1, Dout_pad) f32
    out_ref,                          # (TB, Dout_pad)
    *, d_in: int, gelu_mode: str,
):
    f32 = jnp.float32
    mxu = w_t2_ref.dtype              # bf16 (perf path) or f32 (exact path)

    cond = x_ref[:, d_in:d_in + 1]                       # (TB, 1) f32
    x = x_ref[:, :d_in].astype(mxu)                      # (TB, d_in)

    # Fourier time embedding (f32). [sin | cos] is lane-aligned (C % 128 == 0 at the
    # module default), so the concat is free and feeds one K=2C matmul (full MXU
    # depth on v6e/v7x; neutral on v5e's 128-deep MXU).
    arg = coeff_ref[...] * cond + phase_ref[...]         # (TB, C)
    sc = jnp.concatenate([jnp.sin(arg), jnp.cos(arg)], axis=-1).astype(mxu)

    h = jnp.dot(sc, w_t1_ref[...], preferred_element_type=f32) + b_t1_ref[...]
    h = _gelu(h, gelu_mode).astype(mxu)

    # embed_cond (timestep_embed[2]) + embed_ins (input_embed), bias pre-summed.
    z = (jnp.dot(h, w_t2_ref[...], preferred_element_type=f32)
         + jnp.dot(x, w_in_ref[...], preferred_element_type=f32)
         + b_embed_ref[...])

    # layers = GELU, [Linear(C,C)+GELU] * 2, Linear(C, Dout)
    z = _gelu(z, gelu_mode).astype(mxu)
    z = _gelu(jnp.dot(z, w_l0_ref[...], preferred_element_type=f32) + b_l0_ref[...],
              gelu_mode).astype(mxu)
    z = _gelu(jnp.dot(z, w_l1_ref[...], preferred_element_type=f32) + b_l1_ref[...],
              gelu_mode).astype(mxu)
    out = jnp.dot(z, w_out_ref[...], preferred_element_type=f32) + b_out_ref[...]

    out_ref[...] = out.astype(out_ref.dtype)


def pack_params(params, in_shape, out_shape, mxu_dtype=jnp.bfloat16):
    """One-time parameter packing (hoisted out of the per-call path).

    Zero padding lives on the weight side only (VMEM-resident, not streamed).
    """
    # TODO(synk): optional fp8 MXU feed for weights on v7x once MXU-bound.
    f32 = jnp.float32
    d_in = math.prod(in_shape)
    d_out = math.prod(out_shape)
    C = params["timestep_coeff"].shape[-1]
    d_out_pad = _round_up(d_out, LANE)

    wdt = mxu_dtype
    w_out_p = jnp.zeros((C, d_out_pad), wdt).at[:, :d_out].set(params["w_out"].astype(wdt))
    b_out_p = jnp.zeros((1, d_out_pad), f32).at[:, :d_out].set(params["b_out"].astype(f32))

    packed = dict(
        coeff=params["timestep_coeff"].astype(f32),
        phase=params["timestep_phase"].astype(f32),
        w_t1=params["w_t1"].astype(wdt),                 # (2C, C), unsplit -> K=2C matmul
        b_t1=params["b_t1"].astype(f32),
        w_t2=params["w_t2"].astype(wdt),
        w_in=params["w_in"].astype(wdt),                 # (d_in, C), unpadded
        b_embed=(params["b_in"] + params["b_t2"]).astype(f32),   # pre-summed bias
        w_l0=params["w_l0"].astype(wdt),
        b_l0=params["b_l0"].astype(f32),
        w_l1=params["w_l1"].astype(wdt),
        b_l1=params["b_l1"].astype(f32),
        w_out=w_out_p,
        b_out=b_out_p,
    )
    meta = dict(C=C, d_in=d_in, d_out=d_out, d_out_pad=d_out_pad)
    return packed, meta


def _vmem_budget_bytes():
    """Generation-aware ceiling for vmem_limit_bytes (leave ~25% headroom)."""
    try:
        info = pltpu.get_tpu_info()
        cap = getattr(info, "vmem_capacity_bytes", None)
        if cap:
            return int(cap) * 3 // 4
    except Exception:
        pass
    return 48 << 20                      # v7x-safe fallback (64 MiB physical)


def fourier_mlp_forward(cond, inputs, packed, meta, out_shape, *,
                        block_batch=2048,          # sweep {1024, 2048, 4096} per generation
                        gelu_mode="tanh",          # "tanh"/"sigmoid" -> EUP; "exact" for validation
                        out_dtype=jnp.float32,     # bf16 halves output write traffic if acceptable
                        single_buffer_weights=True):
    """Per-call path: feature-pad-free input prep + one batch-tiled pallas_call."""
    f32 = jnp.float32
    B = inputs.shape[0]
    C, d_in, d_out, d_out_pad = meta["C"], meta["d_in"], meta["d_out"], meta["d_out_pad"]

    # Batch tile: multiple of 8 sublanes, capped so the grid has >= 2 steps whenever
    # the batch allows (lets "parallel" semantics shard across v7x's two TCs).
    B_sub = _round_up(B, SUBLANE)
    TB = _round_up(min(block_batch, B_sub), SUBLANE)
    if B_sub >= 2 * SUBLANE:
        TB = min(TB, _round_up(pl.cdiv(B_sub, 2), SUBLANE))
    B_pad = _round_up(B_sub, TB)
    grid = (B_pad // TB,)

    # Fold cond into the input tile as one extra column: no zero-padded feature
    # streaming through HBM, and no separate narrow (TB,1) DMA stream.
    x_flat = inputs.reshape(B, -1).astype(f32)
    cond_col = jnp.broadcast_to(jnp.reshape(cond, (-1, 1)).astype(f32), (B, 1))
    x_aug = jnp.concatenate([x_flat, cond_col], axis=-1)         # (B, d_in+1)
    if B_pad != B:
        x_aug = jnp.zeros((B_pad, d_in + 1), f32).at[:B].set(x_aug)

    weights = (packed["coeff"], packed["phase"],
               packed["w_t1"], packed["b_t1"],
               packed["w_t2"], packed["w_in"], packed["b_embed"],
               packed["w_l0"], packed["b_l0"],
               packed["w_l1"], packed["b_l1"],
               packed["w_out"], packed["b_out"])

    # Specs: batch-tiled activations; VMEM-resident, single-buffered weights
    # (constant index_map gains nothing from double buffering).
    tiled_in = pl.BlockSpec((TB, d_in + 1), lambda i: (i, 0))
    tiled_out = pl.BlockSpec((TB, d_out_pad), lambda i: (i, 0))

    def resident(shape):
        if single_buffer_weights:
            return pl.BlockSpec(shape, lambda i: (0, 0), pipeline_mode=pl.Buffered(1))
        return pl.BlockSpec(shape, lambda i: (0, 0))

    in_specs = [tiled_in] + [resident(tuple(w.shape)) for w in weights]

    # Cost / VMEM hints.
    out_itemsize = jnp.dtype(out_dtype).itemsize
    weight_bytes = sum(int(w.size) * w.dtype.itemsize for w in weights)
    io_bytes = int(B_pad) * ((d_in + 1) * 4 + d_out_pad * out_itemsize)
    flops = 2 * int(B_pad) * C * (5 * C + d_in + d_out_pad)
    transcend = int(B_pad) * 6 * C                    # sin + cos + 4 GELUs
    cost = pl.CostEstimate(flops=flops, transcendentals=transcend,
                           bytes_accessed=io_bytes + weight_bytes)

    weight_mult = 1 if single_buffer_weights else 2
    vmem_need = (weight_mult * weight_bytes
                 + 2 * TB * (d_in + 1) * 4             # double-buffered input tiles
                 + 2 * TB * d_out_pad * out_itemsize   # double-buffered output tiles
                 + 10 * TB * C * 4                     # live intermediates (sc is 2C wide)
                 + (4 << 20))                          # margin
    vmem_limit = int(min(_vmem_budget_bytes(), max(vmem_need, 32 << 20)))

    out = pl.pallas_call(
        functools.partial(fourier_mlp_kernel, d_in=d_in, gelu_mode=gelu_mode),
        out_shape=jax.ShapeDtypeStruct((B_pad, d_out_pad), out_dtype),
        grid=grid,
        in_specs=in_specs,
        out_specs=tiled_out,
        compiler_params=pltpu.CompilerParams(
            dimension_semantics=("parallel",),
            vmem_limit_bytes=vmem_limit),
        cost_estimate=cost,
    )(x_aug, *weights)

    return out[:B, :d_out].reshape((B,) + tuple(out_shape))


def init_params(key, in_dim, out_dim, channels, zero_init=True):
    """Deterministic parameter init matching the PyTorch module's shapes.

    Weights are stored as (in_features, out_features) = PyTorch weight.T.
    """
    ks = jax.random.split(key, 13)

    def lin(kw, kb, fan_in, fan_out):
        bound = 1.0 / math.sqrt(fan_in)
        w = jax.random.uniform(kw, (fan_in, fan_out), jnp.float32, -bound, bound)
        b = jax.random.uniform(kb, (1, fan_out), jnp.float32, -bound, bound)
        return w, b

    p = {}
    p["timestep_coeff"] = jnp.linspace(0.1, 100.0, channels, dtype=jnp.float32)[None, :]
    p["timestep_phase"] = jax.random.normal(ks[0], (1, channels), jnp.float32)
    p["w_in"], p["b_in"] = lin(ks[1], ks[2], in_dim, channels)
    p["w_t1"], p["b_t1"] = lin(ks[3], ks[4], 2 * channels, channels)
    p["w_t2"], p["b_t2"] = lin(ks[5], ks[6], channels, channels)
    p["w_l0"], p["b_l0"] = lin(ks[7], ks[8], channels, channels)
    p["w_l1"], p["b_l1"] = lin(ks[9], ks[10], channels, channels)
    if zero_init:
        p["w_out"] = jnp.zeros((channels, out_dim), jnp.float32)
        p["b_out"] = jnp.zeros((1, out_dim), jnp.float32)
    else:
        p["w_out"], p["b_out"] = lin(ks[11], ks[12], channels, out_dim)
    return p


def _reference_forward(cond, inputs, p, in_shape, out_shape):
    """Pure-JAX f32 reference mirroring the PyTorch forward."""
    B = inputs.shape[0]
    x = inputs.reshape(B, -1).astype(jnp.float32)
    c = jnp.broadcast_to(jnp.reshape(cond, (-1, 1)), (B, 1)).astype(jnp.float32)
    arg = p["timestep_coeff"] * c + p["timestep_phase"]
    te = jnp.concatenate([jnp.sin(arg), jnp.cos(arg)], axis=-1)
    h = _gelu(te @ p["w_t1"] + p["b_t1"], "exact")
    embed_cond = h @ p["w_t2"] + p["b_t2"]
    embed_ins = x @ p["w_in"] + p["b_in"]
    z = _gelu(embed_ins + embed_cond, "exact")
    z = _gelu(z @ p["w_l0"] + p["b_l0"], "exact")
    z = _gelu(z @ p["w_l1"] + p["b_l1"], "exact")
    out = z @ p["w_out"] + p["b_out"]
    return out.reshape((B,) + tuple(out_shape))


if __name__ == "__main__":
    # Small shapes consistent with the module: in_shape=(4,4), out_shape=(4,4),
    # num_layers=2, channels=128 (module default), batch=8.
    in_shape = (4, 4)
    out_shape = (4, 4)
    channels = 128
    B = 8

    key = jax.random.PRNGKey(0)
    k_param, k_cond, k_x = jax.random.split(key, 3)

    # zero_init=False so the numerical check is non-trivial (zero_init=True also supported).
    params = init_params(k_param, math.prod(in_shape), math.prod(out_shape),
                         channels, zero_init=False)
    cond = jax.random.uniform(k_cond, (B,), jnp.float32)
    inputs = jax.random.normal(k_x, (B,) + in_shape, jnp.float32)

    ref = _reference_forward(cond, inputs, params, in_shape, out_shape)

    # Exact path: f32 MXU feed + erf GELU -> tight check vs the PyTorch-equivalent reference.
    packed_f32, meta = pack_params(params, in_shape, out_shape, mxu_dtype=jnp.float32)
    out_exact = jax.block_until_ready(
        fourier_mlp_forward(cond, inputs, packed_f32, meta, out_shape, gelu_mode="exact"))
    assert out_exact.shape == (B,) + out_shape
    assert jnp.allclose(out_exact, ref, atol=1e-4, rtol=1e-4), "exact kernel mismatch vs reference"

    # Performance path: bf16 MXU feed, tanh GELU on the EUP -> loose check.
    packed_bf16, meta = pack_params(params, in_shape, out_shape, mxu_dtype=jnp.bfloat16)
    out_perf = jax.block_until_ready(
        fourier_mlp_forward(cond, inputs, packed_bf16, meta, out_shape, gelu_mode="tanh"))
    assert jnp.all(jnp.isfinite(out_perf))
    assert jnp.allclose(out_perf, ref, atol=1e-1, rtol=1e-1), "perf kernel drifted too far"

    print("KERNEL_OK")
</pallas_src>

<mosaic_0001>
module attributes {stable_mosaic.version = 11 : i64} {
  func.func @fourier_mlp_kernel(%arg0: i32, %arg1: memref<8x17xf32, #tpu.memory_space<vmem>>, %arg2: memref<1x128xf32, #tpu.memory_space<vmem>>, %arg3: memref<1x128xf32, #tpu.memory_space<vmem>>, %arg4: memref<256x128xf32, #tpu.memory_space<vmem>>, %arg5: memref<1x128xf32, #tpu.memory_space<vmem>>, %arg6: memref<128x128xf32, #tpu.memory_space<vmem>>, %arg7: memref<16x128xf32, #tpu.memory_space<vmem>>, %arg8: memref<1x128xf32, #tpu.memory_space<vmem>>, %arg9: memref<128x128xf32, #tpu.memory_space<vmem>>, %arg10: memref<1x128xf32, #tpu.memory_space<vmem>>, %arg11: memref<128x128xf32, #tpu.memory_space<vmem>>, %arg12: memref<1x128xf32, #tpu.memory_space<vmem>>, %arg13: memref<128x128xf32, #tpu.memory_space<vmem>>, %arg14: memref<1x128xf32, #tpu.memory_space<vmem>>, %arg15: memref<8x128xf32, #tpu.memory_space<vmem>>) attributes {dimension_semantics = [#tpu.dimension_semantics<parallel>], iteration_bounds = array<i64: 1>, scalar_prefetch = 0 : i64, scratch_operands = 0 : i64, tpu.core_type = #tpu.core_type<tc>, window_params = [{transform_indices = @transform_0, window_bounds = array<i64: 8, 17>}, {pipeline_mode = #tpu.pipeline_mode<synchronous>, transform_indices = @transform_1, window_bounds = array<i64: 1, 128>}, {pipeline_mode = #tpu.pipeline_mode<synchronous>, transform_indices = @transform_2, window_bounds = array<i64: 1, 128>}, {pipeline_mode = #tpu.pipeline_mode<synchronous>, transform_indices = @transform_3, window_bounds = array<i64: 256, 128>}, {pipeline_mode = #tpu.pipeline_mode<synchronous>, transform_indices = @transform_4, window_bounds = array<i64: 1, 128>}, {pipeline_mode = #tpu.pipeline_mode<synchronous>, transform_indices = @transform_5, window_bounds = array<i64: 128, 128>}, {pipeline_mode = #tpu.pipeline_mode<synchronous>, transform_indices = @transform_6, window_bounds = array<i64: 16, 128>}, {pipeline_mode = #tpu.pipeline_mode<synchronous>, transform_indices = @transform_7, window_bounds = array<i64: 1, 128>}, {pipeline_mode = #tpu.pipeline_mode<synchronous>, transform_indices = @transform_8, window_bounds = array<i64: 128, 128>}, {pipeline_mode = #tpu.pipeline_mode<synchronous>, transform_indices = @transform_9, window_bounds = array<i64: 1, 128>}, {pipeline_mode = #tpu.pipeline_mode<synchronous>, transform_indices = @transform_10, window_bounds = array<i64: 128, 128>}, {pipeline_mode = #tpu.pipeline_mode<synchronous>, transform_indices = @transform_11, window_bounds = array<i64: 1, 128>}, {pipeline_mode = #tpu.pipeline_mode<synchronous>, transform_indices = @transform_12, window_bounds = array<i64: 128, 128>}, {pipeline_mode = #tpu.pipeline_mode<synchronous>, transform_indices = @transform_13, window_bounds = array<i64: 1, 128>}, {transform_indices = @transform_14, window_bounds = array<i64: 8, 128>}]} {
    %c0 = arith.constant 0 : index
    %c16 = arith.constant 16 : index
    %0 = vector.load %arg1[%c0, %c16] : memref<8x17xf32, #tpu.memory_space<vmem>>, vector<8x1xf32>
    %c0_0 = arith.constant 0 : index
    %c0_1 = arith.constant 0 : index
    %1 = vector.load %arg1[%c0_0, %c0_1] : memref<8x17xf32, #tpu.memory_space<vmem>>, vector<8x16xf32>
    %c0_2 = arith.constant 0 : index
    %c0_3 = arith.constant 0 : index
    %2 = vector.load %arg2[%c0_2, %c0_3] : memref<1x128xf32, #tpu.memory_space<vmem>>, vector<1x128xf32>
    %3 = vector.broadcast %2 : vector<1x128xf32> to vector<8x128xf32>
    %4 = vector.broadcast %0 : vector<8x1xf32> to vector<8x128xf32>
    %5 = arith.mulf %3, %4 : vector<8x128xf32>
    %c0_4 = arith.constant 0 : index
    %c0_5 = arith.constant 0 : index
    %6 = vector.load %arg3[%c0_4, %c0_5] : memref<1x128xf32, #tpu.memory_space<vmem>>, vector<1x128xf32>
    %7 = vector.broadcast %6 : vector<1x128xf32> to vector<8x128xf32>
    %8 = arith.addf %5, %7 : vector<8x128xf32>
    %9 = math.sin %8 : vector<8x128xf32>
    %10 = math.cos %8 : vector<8x128xf32>
    %11 = tpu.concatenate %9, %10 in 1 : vector<8x128xf32>, vector<8x128xf32> -> vector<8x256xf32>
    %c0_6 = arith.constant 0 : index
    %c0_7 = arith.constant 0 : index
    %12 = vector.load %arg4[%c0_6, %c0_7] : memref<256x128xf32, #tpu.memory_space<vmem>>, vector<256x128xf32>
    %cst = arith.constant dense<0.000000e+00> : vector<8x128xf32>
    %13 = tpu.matmul %11, %12, %cst {dimension_numbers = #tpu.dot_dimension_numbers<[1], [0], [0], [1], [0, 0, 1, 1], [], []>} : vector<8x256xf32>, vector<256x128xf32>, vector<8x128xf32> -> vector<8x128xf32>
    %c0_8 = arith.constant 0 : index
    %c0_9 = arith.constant 0 : index
    %14 = vector.load %arg5[%c0_8, %c0_9] : memref<1x128xf32, #tpu.memory_space<vmem>>, vector<1x128xf32>
    %15 = vector.broadcast %14 : vector<1x128xf32> to vector<8x128xf32>
    %16 = arith.addf %13, %15 : vector<8x128xf32>
    %cst_10 = arith.constant 5.000000e-01 : f32
    %17 = vector.broadcast %cst_10 : f32 to vector<8x128xf32>
    %18 = arith.mulf %17, %16 : vector<8x128xf32>
    %cst_11 = arith.constant 0.707106769 : f32
    %19 = vector.broadcast %cst_11 : f32 to vector<8x128xf32>
    %20 = arith.mulf %16, %19 : vector<8x128xf32>
    %21 = math.erf %20 : vector<8x128xf32>
    %cst_12 = arith.constant 1.000000e+00 : f32
    %22 = vector.broadcast %cst_12 : f32 to vector<8x128xf32>
    %23 = arith.addf %22, %21 : vector<8x128xf32>
    %24 = arith.mulf %18, %23 : vector<8x128xf32>
    %c0_13 = arith.constant 0 : index
    %c0_14 = arith.constant 0 : index
    %25 = vector.load %arg6[%c0_13, %c0_14] : memref<128x128xf32, #tpu.memory_space<vmem>>, vector<128x128xf32>
    %cst_15 = arith.constant dense<0.000000e+00> : vector<8x128xf32>
    %26 = tpu.matmul %24, %25, %cst_15 {dimension_numbers = #tpu.dot_dimension_numbers<[1], [0], [0], [1], [0, 0, 1, 1], [], []>} : vector<8x128xf32>, vector<128x128xf32>, vector<8x128xf32> -> vector<8x128xf32>
    %c0_16 = arith.constant 0 : index
    %c0_17 = arith.constant 0 : index
    %27 = vector.load %arg7[%c0_16, %c0_17] : memref<16x128xf32, #tpu.memory_space<vmem>>, vector<16x128xf32>
    %cst_18 = arith.constant dense<0.000000e+00> : vector<8x128xf32>
    %28 = tpu.matmul %1, %27, %cst_18 {dimension_numbers = #tpu.dot_dimension_numbers<[1], [0], [0], [1], [0, 0, 1, 1], [], []>} : vector<8x16xf32>, vector<16x128xf32>, vector<8x128xf32> -> vector<8x128xf32>
    %29 = arith.addf %26, %28 : vector<8x128xf32>
    %c0_19 = arith.constant 0 : index
    %c0_20 = arith.constant 0 : index
    %30 = vector.load %arg8[%c0_19, %c0_20] : memref<1x128xf32, #tpu.memory_space<vmem>>, vector<1x128xf32>
    %31 = vector.broadcast %30 : vector<1x128xf32> to vector<8x128xf32>
    %32 = arith.addf %29, %31 : vector<8x128xf32>
    %cst_21 = arith.constant 5.000000e-01 : f32
    %33 = vector.broadcast %cst_21 : f32 to vector<8x128xf32>
    %34 = arith.mulf %33, %32 : vector<8x128xf32>
    %cst_22 = arith.constant 0.707106769 : f32
    %35 = vector.broadcast %cst_22 : f32 to vector<8x128xf32>
    %36 = arith.mulf %32, %35 : vector<8x128xf32>
    %37 = math.erf %36 : vector<8x128xf32>
    %cst_23 = arith.constant 1.000000e+00 : f32
    %38 = vector.broadcast %cst_23 : f32 to vector<8x128xf32>
    %39 = arith.addf %38, %37 : vector<8x128xf32>
    %40 = arith.mulf %34, %39 : vector<8x128xf32>
    %c0_24 = arith.constant 0 : index
    %c0_25 = arith.constant 0 : index
    %41 = vector.load %arg9[%c0_24, %c0_25] : memref<128x128xf32, #tpu.memory_space<vmem>>, vector<128x128xf32>
    %cst_26 = arith.constant dense<0.000000e+00> : vector<8x128xf32>
    %42 = tpu.matmul %40, %41, %cst_26 {dimension_numbers = #tpu.dot_dimension_numbers<[1], [0], [0], [1], [0, 0, 1, 1], [], []>} : vector<8x128xf32>, vector<128x128xf32>, vector<8x128xf32> -> vector<8x128xf32>
    %c0_27 = arith.constant 0 : index
    %c0_28 = arith.constant 0 : index
    %43 = vector.load %arg10[%c0_27, %c0_28] : memref<1x128xf32, #tpu.memory_space<vmem>>, vector<1x128xf32>
    %44 = vector.broadcast %43 : vector<1x128xf32> to vector<8x128xf32>
    %45 = arith.addf %42, %44 : vector<8x128xf32>
    %cst_29 = arith.constant 5.000000e-01 : f32
    %46 = vector.broadcast %cst_29 : f32 to vector<8x128xf32>
    %47 = arith.mulf %46, %45 : vector<8x128xf32>
    %cst_30 = arith.constant 0.707106769 : f32
    %48 = vector.broadcast %cst_30 : f32 to vector<8x128xf32>
    %49 = arith.mulf %45, %48 : vector<8x128xf32>
    %50 = math.erf %49 : vector<8x128xf32>
    %cst_31 = arith.constant 1.000000e+00 : f32
    %51 = vector.broadcast %cst_31 : f32 to vector<8x128xf32>
    %52 = arith.addf %51, %50 : vector<8x128xf32>
    %53 = arith.mulf %47, %52 : vector<8x128xf32>
    %c0_32 = arith.constant 0 : index
    %c0_33 = arith.constant 0 : index
    %54 = vector.load %arg11[%c0_32, %c0_33] : memref<128x128xf32, #tpu.memory_space<vmem>>, vector<128x128xf32>
    %cst_34 = arith.constant dense<0.000000e+00> : vector<8x128xf32>
    %55 = tpu.matmul %53, %54, %cst_34 {dimension_numbers = #tpu.dot_dimension_numbers<[1], [0], [0], [1], [0, 0, 1, 1], [], []>} : vector<8x128xf32>, vector<128x128xf32>, vector<8x128xf32> -> vector<8x128xf32>
    %c0_35 = arith.constant 0 : index
    %c0_36 = arith.constant 0 : index
    %56 = vector.load %arg12[%c0_35, %c0_36] : memref<1x128xf32, #tpu.memory_space<vmem>>, vector<1x128xf32>
    %57 = vector.broadcast %56 : vector<1x128xf32> to vector<8x128xf32>
    %58 = arith.addf %55, %57 : vector<8x128xf32>
    %cst_37 = arith.constant 5.000000e-01 : f32
    %59 = vector.broadcast %cst_37 : f32 to vector<8x128xf32>
    %60 = arith.mulf %59, %58 : vector<8x128xf32>
    %cst_38 = arith.constant 0.707106769 : f32
    %61 = vector.broadcast %cst_38 : f32 to vector<8x128xf32>
    %62 = arith.mulf %58, %61 : vector<8x128xf32>
    %63 = math.erf %62 : vector<8x128xf32>
    %cst_39 = arith.constant 1.000000e+00 : f32
    %64 = vector.broadcast %cst_39 : f32 to vector<8x128xf32>
    %65 = arith.addf %64, %63 : vector<8x128xf32>
    %66 = arith.mulf %60, %65 : vector<8x128xf32>
    %c0_40 = arith.constant 0 : index
    %c0_41 = arith.constant 0 : index
    %67 = vector.load %arg13[%c0_40, %c0_41] : memref<128x128xf32, #tpu.memory_space<vmem>>, vector<128x128xf32>
    %cst_42 = arith.constant dense<0.000000e+00> : vector<8x128xf32>
    %68 = tpu.matmul %66, %67, %cst_42 {dimension_numbers = #tpu.dot_dimension_numbers<[1], [0], [0], [1], [0, 0, 1, 1], [], []>} : vector<8x128xf32>, vector<128x128xf32>, vector<8x128xf32> -> vector<8x128xf32>
    %c0_43 = arith.constant 0 : index
    %c0_44 = arith.constant 0 : index
    %69 = vector.load %arg14[%c0_43, %c0_44] : memref<1x128xf32, #tpu.memory_space<vmem>>, vector<1x128xf32>
    %70 = vector.broadcast %69 : vector<1x128xf32> to vector<8x128xf32>
    %71 = arith.addf %68, %70 : vector<8x128xf32>
    %c0_45 = arith.constant 0 : index
    %c0_46 = arith.constant 0 : index
    %72 = vector.load %arg15[%c0_45, %c0_46] : memref<8x128xf32, #tpu.memory_space<vmem>>, vector<8x128xf32>
    tpu.vector_store %arg15[%c0_45, %c0_46], %71 {strides = array<i32>} : memref<8x128xf32, #tpu.memory_space<vmem>>, vector<8x128xf32>,
    return
  }
  func.func @transform_0(%arg0: i32) -> (i32, i32) {
    %c0_i32 = arith.constant 0 : i32
    %c0_i32_0 = arith.constant 0 : i32
    return %arg0, %c0_i32 : i32, i32
  }
  func.func @transform_1(%arg0: i32) -> (i32, i32) {
    %c0_i32 = arith.constant 0 : i32
    %c0_i32_0 = arith.constant 0 : i32
    %c0_i32_1 = arith.constant 0 : i32
    return %c0_i32, %c0_i32_0 : i32, i32
  }
  func.func @transform_2(%arg0: i32) -> (i32, i32) {
    %c0_i32 = arith.constant 0 : i32
    %c0_i32_0 = arith.constant 0 : i32
    %c0_i32_1 = arith.constant 0 : i32
    return %c0_i32, %c0_i32_0 : i32, i32
  }
  func.func @transform_3(%arg0: i32) -> (i32, i32) {
    %c0_i32 = arith.constant 0 : i32
    %c0_i32_0 = arith.constant 0 : i32
    %c0_i32_1 = arith.constant 0 : i32
    return %c0_i32, %c0_i32_0 : i32, i32
  }
  func.func @transform_4(%arg0: i32) -> (i32, i32) {
    %c0_i32 = arith.constant 0 : i32
    %c0_i32_0 = arith.constant 0 : i32
    %c0_i32_1 = arith.constant 0 : i32
    return %c0_i32, %c0_i32_0 : i32, i32
  }
  func.func @transform_5(%arg0: i32) -> (i32, i32) {
    %c0_i32 = arith.constant 0 : i32
    %c0_i32_0 = arith.constant 0 : i32
    %c0_i32_1 = arith.constant 0 : i32
    return %c0_i32, %c0_i32_0 : i32, i32
  }
  func.func @transform_6(%arg0: i32) -> (i32, i32) {
    %c0_i32 = arith.constant 0 : i32
    %c0_i32_0 = arith.constant 0 : i32
    %c0_i32_1 = arith.constant 0 : i32
    return %c0_i32, %c0_i32_0 : i32, i32
  }
  func.func @transform_7(%arg0: i32) -> (i32, i32) {
    %c0_i32 = arith.constant 0 : i32
    %c0_i32_0 = arith.constant 0 : i32
    %c0_i32_1 = arith.constant 0 : i32
    return %c0_i32, %c0_i32_0 : i32, i32
  }
  func.func @transform_8(%arg0: i32) -> (i32, i32) {
    %c0_i32 = arith.constant 0 : i32
    %c0_i32_0 = arith.constant 0 : i32
    %c0_i32_1 = arith.constant 0 : i32
    return %c0_i32, %c0_i32_0 : i32, i32
  }
  func.func @transform_9(%arg0: i32) -> (i32, i32) {
    %c0_i32 = arith.constant 0 : i32
    %c0_i32_0 = arith.constant 0 : i32
    %c0_i32_1 = arith.constant 0 : i32
    return %c0_i32, %c0_i32_0 : i32, i32
  }
  func.func @transform_10(%arg0: i32) -> (i32, i32) {
    %c0_i32 = arith.constant 0 : i32
    %c0_i32_0 = arith.constant 0 : i32
    %c0_i32_1 = arith.constant 0 : i32
    return %c0_i32, %c0_i32_0 : i32, i32
  }
  func.func @transform_11(%arg0: i32) -> (i32, i32) {
    %c0_i32 = arith.constant 0 : i32
    %c0_i32_0 = arith.constant 0 : i32
    %c0_i32_1 = arith.constant 0 : i32
    return %c0_i32, %c0_i32_0 : i32, i32
  }
  func.func @transform_12(%arg0: i32) -> (i32, i32) {
    %c0_i32 = arith.constant 0 : i32
    %c0_i32_0 = arith.constant 0 : i32
    %c0_i32_1 = arith.constant 0 : i32
    return %c0_i32, %c0_i32_0 : i32, i32
  }
  func.func @transform_13(%arg0: i32) -> (i32, i32) {
    %c0_i32 = arith.constant 0 : i32
    %c0_i32_0 = arith.constant 0 : i32
    %c0_i32_1 = arith.constant 0 : i32
    return %c0_i32, %c0_i32_0 : i32, i32
  }
  func.func @transform_14(%arg0: i32) -> (i32, i32) {
    %c0_i32 = arith.constant 0 : i32
    %c0_i32_0 = arith.constant 0 : i32
    return %arg0, %c0_i32 : i32, i32
  }
}

</mosaic_0001>

<llo_original>
// kernel: tpu_custom_call.1
$region0: #{tpu_custom_call.1}
  #allocation0 [shape = 'u32[]', space=smem, size = 0x4, offset = 0x4, fixed_abs, tag = 'smem constant byte address 0x4 - core index']
  #allocation1 [shape = 'u32[72,128]{1,0:T(1,128)}', space=vmem, size = 0x9000, scoped, tag = 'internal scratch']
  %s0 = inlined_call_operand.hbm [shape: f32[8,17], index: 0, kind: input, shape index: {}]
  %s1 = inlined_call_operand.hbm [shape: f32[1,128], index: 1, kind: input, shape index: {}]
  %s2 = inlined_call_operand.vmem [shape: f32[1,128], index: 2, kind: input, shape index: {}]
  %s3 = inlined_call_operand.hbm [shape: f32[256,128], index: 3, kind: input, shape index: {}]
  %s4 = inlined_call_operand.vmem [shape: f32[1,128], index: 4, kind: input, shape index: {}]
  %s5 = inlined_call_operand.hbm [shape: f32[128,128], index: 5, kind: input, shape index: {}]
  %s6 = inlined_call_operand.hbm [shape: f32[16,128], index: 6, kind: input, shape index: {}]
  %s7 = inlined_call_operand.vmem [shape: f32[1,128], index: 7, kind: input, shape index: {}]
  %s8 = inlined_call_operand.hbm [shape: f32[128,128], index: 8, kind: input, shape index: {}]
  %s9 = inlined_call_operand.vmem [shape: f32[1,128], index: 9, kind: input, shape index: {}]
  %s10 = inlined_call_operand.hbm [shape: f32[128,128], index: 10, kind: input, shape index: {}]
  %s11 = inlined_call_operand.vmem [shape: f32[1,128], index: 11, kind: input, shape index: {}]
  %s12 = inlined_call_operand.hbm [shape: f32[128,128], index: 12, kind: input, shape index: {}]
  %s13 = inlined_call_operand.vmem [shape: f32[1,128], index: 13, kind: input, shape index: {}]
  %s14 = inlined_call_operand.hbm [shape: f32[8,128], index: 14, kind: output, shape index: {}]
  %s15 = sld [smem:[#allocation0]]
  $region98: #{tpu_custom_call.1} parent=0
    _
  %s17 = ssub.s32 1, %s15
  %s18 = scalar_select 0, %s17, %s15
  $region1: #{tpu_custom_call.1} parent=0
    #allocation2 [shape = 'u8[4096]{0}', space=vmem, size = 0x1000, scoped, tag = 'input window, operand 0, single buffered']
    #allocation3 [shape = 's32[1]{0}', space=sflag, size = 0x4, scoped, tag = 'scoped memory for tpu_custom_call.1']
    #allocation4 [shape = 's32[1]{0}', space=sflag, size = 0x4, scoped, tag = 'scoped memory for tpu_custom_call.1']
    #allocation5 [shape = 'u8[512]{0}', space=vmem, size = 0x400, scoped, tag = 'input window, operand 1, single buffered']
    #allocation6 [shape = 's32[1]{0}', space=sflag, size = 0x4, scoped, tag = 'scoped memory for tpu_custom_call.1']
    #allocation7 [shape = 'u8[131072]{0}', space=vmem, size = 0x20000, scoped, tag = 'input window, operand 3, single buffered']
    #allocation8 [shape = 'u8[65536]{0}', space=vmem, size = 0x10000, scoped, tag = 'input window, operand 5, single buffered']
    #allocation9 [shape = 's32[1]{0}', space=sflag, size = 0x4, scoped, tag = 'scoped memory for tpu_custom_call.1']
    #allocation10 [shape = 'u8[8192]{0}', space=vmem, size = 0x2000, scoped, tag = 'input window, operand 6, single buffered']
    #allocation11 [shape = 'u8[65536]{0}', space=vmem, size = 0x10000, scoped, tag = 'input window, operand 8, single buffered']
    #allocation12 [shape = 's32[1]{0}', space=sflag, size = 0x4, scoped, tag = 'scoped memory for tpu_custom_call.1']
    #allocation13 [shape = 'u8[65536]{0}', space=vmem, size = 0x10000, scoped, tag = 'input window, operand 10, single buffered']
    #allocation14 [shape = 'u8[65536]{0}', space=vmem, size = 0x10000, scoped, tag = 'input window, operand 12, single buffered']
    #allocation15 [shape = 's32[1]{0}', space=sflag, size = 0x4, scoped, tag = 'scoped memory for tpu_custom_call.1']
    #allocation16 [shape = 'u8[4096]{0}', space=vmem, size = 0x1000, scoped, tag = 'output window, operand 0, single buffered']
    %19 = vsyncpa [#allocation3], 0
    %20 = vsyncpa [#allocation6], 0
    %21 = vsyncpa [#allocation9], 0
    %22 = vsyncpa [#allocation12], 0
    %23 = vsyncpa [#allocation15], 0
    %24 = vsyncpa [#allocation4], 0
    // Predicated region
    $region2: #{tpu_custom_call.1} parent=1 // pred_check
      _
    $region3: #{tpu_custom_call.1} parent=1 // pred_check_branch
      %26 = sbr.rel (0) target = $region5
    $region4: #{tpu_custom_call.1} parent=1 // pred_region
      %28 = vsyncadd [#allocation3], 0
      %s30 = sshll.u32 %s0, 4
      %s31 = int_to_ptr.hbm [resolvable:$true] %s30
      %s32 = sshll.u32 [#allocation2], 4
      %s33 = int_to_ptr.vmem [resolvable:$true] %s32
      %35 = dma.hbm_to_vmem [thread:$0]  %s31, 128, %s33, [#allocation3]
    $region5: #{tpu_custom_call.1} parent=1 // pred_fallthru
      _
    // Predicated region
    $region6: #{tpu_custom_call.1} parent=1 // pred_check
      _
    $region7: #{tpu_custom_call.1} parent=1 // pred_check_branch
      %37 = sbr.rel (0) target = $region9
    $region8: #{tpu_custom_call.1} parent=1 // pred_region
      %39 = vsyncadd [#allocation6], 0
      %s41 = sshll.u32 %s1, 4
      %s42 = int_to_ptr.hbm [resolvable:$true] %s41
      %s43 = sshll.u32 [#allocation5], 4
      %s44 = int_to_ptr.vmem [resolvable:$true] %s43
      %46 = dma.hbm_to_vmem [thread:$0]  %s42, 16, %s44, [#allocation6]
    $region9: #{tpu_custom_call.1} parent=1 // pred_fallthru
      _
    // Predicated region
    $region10: #{tpu_custom_call.1} parent=1 // pred_check
      _
    $region11: #{tpu_custom_call.1} parent=1 // pred_check_branch
      %48 = sbr.rel (0) target = $region13
    $region12: #{tpu_custom_call.1} parent=1 // pred_region
      _
    $region13: #{tpu_custom_call.1} parent=1 // pred_fallthru
      _
    // Predicated region
    $region14: #{tpu_custom_call.1} parent=1 // pred_check
      _
    $region15: #{tpu_custom_call.1} parent=1 // pred_check_branch
      %50 = sbr.rel (0) target = $region17
    $region16: #{tpu_custom_call.1} parent=1 // pred_region
      %52 = vsyncadd [#allocation6], 0
      %s53 = sshll.u32 %s3, 4
      %s54 = int_to_ptr.hbm [resolvable:$true] %s53
      %s55 = sshll.u32 [#allocation7], 4
      %s56 = int_to_ptr.vmem [resolvable:$true] %s55
      %61 = dma.hbm_to_vmem [thread:$0]  %s54, 4096, %s56, [#allocation6], 128, 128, 8
    $region17: #{tpu_custom_call.1} parent=1 // pred_fallthru
      _
    // Predicated region
    $region18: #{tpu_custom_call.1} parent=1 // pred_check
      _
    $region19: #{tpu_custom_call.1} parent=1 // pred_check_branch
      %63 = sbr.rel (0) target = $region21
    $region20: #{tpu_custom_call.1} parent=1 // pred_region
      _
    $region21: #{tpu_custom_call.1} parent=1 // pred_fallthru
      _
    // Predicated region
    $region22: #{tpu_custom_call.1} parent=1 // pred_check
      _
    $region23: #{tpu_custom_call.1} parent=1 // pred_check_branch
      %65 = sbr.rel (0) target = $region25
    $region24: #{tpu_custom_call.1} parent=1 // pred_region
      %67 = vsyncadd [#allocation9], 0
      %s68 = sshll.u32 %s5, 4
      %s69 = int_to_ptr.hbm [resolvable:$true] %s68
      %s70 = sshll.u32 [#allocation8], 4
      %s71 = int_to_ptr.vmem [resolvable:$true] %s70
      %76 = dma.hbm_to_vmem [thread:$0]  %s69, 2048, %s71, [#allocation9], 128, 128, 8
    $region25: #{tpu_custom_call.1} parent=1 // pred_fallthru
      _
    // Predicated region
    $region26: #{tpu_custom_call.1} parent=1 // pred_check
      _
    $region27: #{tpu_custom_call.1} parent=1 // pred_check_branch
      %78 = sbr.rel (0) target = $region29
    $region28: #{tpu_custom_call.1} parent=1 // pred_region
      %80 = vsyncadd [#allocation9], 0
      %s81 = sshll.u32 %s6, 4
      %s82 = int_to_ptr.hbm [resolvable:$true] %s81
      %s83 = sshll.u32 [#allocation10], 4
      %s84 = int_to_ptr.vmem [resolvable:$true] %s83
      %89 = dma.hbm_to_vmem [thread:$0]  %s82, 256, %s84, [#allocation9], 128, 128, 8
    $region29: #{tpu_custom_call.1} parent=1 // pred_fallthru
      _
    // Predicated region
    $region30: #{tpu_custom_call.1} parent=1 // pred_check
      _
    $region31: #{tpu_custom_call.1} parent=1 // pred_check_branch
      %91 = sbr.rel (0) target = $region33
    $region32: #{tpu_custom_call.1} parent=1 // pred_region
      _
    $region33: #{tpu_custom_call.1} parent=1 // pred_fallthru
      _
    // Predicated region
    $region34: #{tpu_custom_call.1} parent=1 // pred_check
      _
    $region35: #{tpu_custom_call.1} parent=1 // pred_check_branch
      %93 = sbr.rel (0) target = $region37
    $region36: #{tpu_custom_call.1} parent=1 // pred_region
      %95 = vsyncadd [#allocation12], 0
      %s96 = sshll.u32 %s8, 4
      %s97 = int_to_ptr.hbm [resolvable:$true] %s96
      %s98 = sshll.u32 [#allocation11], 4
      %s99 = int_to_ptr.vmem [resolvable:$true] %s98
      %104 = dma.hbm_to_vmem [thread:$0]  %s97, 2048, %s99, [#allocation12], 128, 128, 8
    $region37: #{tpu_custom_call.1} parent=1 // pred_fallthru
      _
    // Predicated region
    $region38: #{tpu_custom_call.1} parent=1 // pred_check
      _
    $region39: #{tpu_custom_call.1} parent=1 // pred_check_branch
      %106 = sbr.rel (0) target = $region41
    $region40: #{tpu_custom_call.1} parent=1 // pred_region
      _
    $region41: #{tpu_custom_call.1} parent=1 // pred_fallthru
      _
    // Predicated region
    $region42: #{tpu_custom_call.1} parent=1 // pred_check
      _
    $region43: #{tpu_custom_call.1} parent=1 // pred_check_branch
      %108 = sbr.rel (0) target = $region45
    $region44: #{tpu_custom_call.1} parent=1 // pred_region
      %110 = vsyncadd [#allocation12], 0
      %s111 = sshll.u32 %s10, 4
      %s112 = int_to_ptr.hbm [resolvable:$true] %s111
      %s113 = sshll.u32 [#allocation13], 4
      %s114 = int_to_ptr.vmem [resolvable:$true] %s113
      %119 = dma.hbm_to_vmem [thread:$0]  %s112, 2048, %s114, [#allocation12], 128, 128, 8
    $region45: #{tpu_custom_call.1} parent=1 // pred_fallthru
      _
    // Predicated region
    $region46: #{tpu_custom_call.1} parent=1 // pred_check
      _
    $region47: #{tpu_custom_call.1} parent=1 // pred_check_branch
      %121 = sbr.rel (0) target = $region49
    $region48: #{tpu_custom_call.1} parent=1 // pred_region
      _
    $region49: #{tpu_custom_call.1} parent=1 // pred_fallthru
      _
    // Predicated region
    $region50: #{tpu_custom_call.1} parent=1 // pred_check
      _
    $region51: #{tpu_custom_call.1} parent=1 // pred_check_branch
      %123 = sbr.rel (0) target = $region53
    $region52: #{tpu_custom_call.1} parent=1 // pred_region
      %125 = vsyncadd [#allocation15], 0
      %s126 = sshll.u32 %s12, 4
      %s127 = int_to_ptr.hbm [resolvable:$true] %s126
      %s128 = sshll.u32 [#allocation14], 4
      %s129 = int_to_ptr.vmem [resolvable:$true] %s128
      %134 = dma.hbm_to_vmem [thread:$0]  %s127, 2048, %s129, [#allocation15], 128, 128, 8
    $region53: #{tpu_custom_call.1} parent=1 // pred_fallthru
      _
    // Predicated region
    $region54: #{tpu_custom_call.1} parent=1 // pred_check
      _
    $region55: #{tpu_custom_call.1} parent=1 // pred_check_branch
      %136 = sbr.rel (0) target = $region57
    $region56: #{tpu_custom_call.1} parent=1 // pred_region
      _
    $region57: #{tpu_custom_call.1} parent=1 // pred_fallthru
      _
    // Predicated region
    $region58: #{tpu_custom_call.1} parent=1 // pred_check
      _
    $region59: #{tpu_custom_call.1} parent=1 // pred_check_branch
      %138 = sbr.rel (0) target = $region61
    $region60: #{tpu_custom_call.1} parent=1 // pred_region
      %140 = dma.done [#allocation3], 128
    $region61: #{tpu_custom_call.1} parent=1 // pred_fallthru
      _
    // Predicated region
    $region62: #{tpu_custom_call.1} parent=1 // pred_check
      _
    $region63: #{tpu_custom_call.1} parent=1 // pred_check_branch
      %142 = sbr.rel (0) target = $region65
    $region64: #{tpu_custom_call.1} parent=1 // pred_region
      %144 = dma.done [#allocation6], 16
    $region65: #{tpu_custom_call.1} parent=1 // pred_fallthru
      _
    // Predicated region
    $region66: #{tpu_custom_call.1} parent=1 // pred_check
      _
    $region67: #{tpu_custom_call.1} parent=1 // pred_check_branch
      %146 = sbr.rel (0) target = $region69
    $region68: #{tpu_custom_call.1} parent=1 // pred_region
      %148 = dma.done [#allocation6], 4096
    $region69: #{tpu_custom_call.1} parent=1 // pred_fallthru
      _
    // Predicated region
    $region70: #{tpu_custom_call.1} parent=1 // pred_check
      _
    $region71: #{tpu_custom_call.1} parent=1 // pred_check_branch
      %150 = sbr.rel (0) target = $region73
    $region72: #{tpu_custom_call.1} parent=1 // pred_region
      %152 = dma.done [#allocation9], 2048
    $region73: #{tpu_custom_call.1} parent=1 // pred_fallthru
      _
    // Predicated region
    $region74: #{tpu_custom_call.1} parent=1 // pred_check
      _
    $region75: #{tpu_custom_call.1} parent=1 // pred_check_branch
      %154 = sbr.rel (0) target = $region77
    $region76: #{tpu_custom_call.1} parent=1 // pred_region
      %156 = dma.done [#allocation9], 256
    $region77: #{tpu_custom_call.1} parent=1 // pred_fallthru
      _
    // Predicated region
    $region78: #{tpu_custom_call.1} parent=1 // pred_check
      _
    $region79: #{tpu_custom_call.1} parent=1 // pred_check_branch
      %158 = sbr.rel (0) target = $region81
    $region80: #{tpu_custom_call.1} parent=1 // pred_region
      %160 = dma.done [#allocation12], 2048
    $region81: #{tpu_custom_call.1} parent=1 // pred_fallthru
      _
    // Predicated region
    $region82: #{tpu_custom_call.1} parent=1 // pred_check
      _
    $region83: #{tpu_custom_call.1} parent=1 // pred_check_branch
      %162 = sbr.rel (0) target = $region85
    $region84: #{tpu_custom_call.1} parent=1 // pred_region
      %164 = dma.done [#allocation12], 2048
    $region85: #{tpu_custom_call.1} parent=1 // pred_fallthru
      _
    // Predicated region
    $region86: #{tpu_custom_call.1} parent=1 // pred_check
      _
    $region87: #{tpu_custom_call.1} parent=1 // pred_check_branch
      %166 = sbr.rel (0) target = $region89
    $region88: #{tpu_custom_call.1} parent=1 // pred_region
      %168 = dma.done [#allocation15], 2048
    $region89: #{tpu_custom_call.1} parent=1 // pred_fallthru
      _
    %v169 = vld [vmem:[#allocation2] sm:$0xff]
    %v170 = vld [vmem:[#allocation5] sm:$0x1]
    %v172 = vperm.slane %v170, 0
    %175 = vset.pattern.permute.xlu0 16
    %176 = vperm.xlu0 %175, %v169
    %v177 = vpop.permute.xlu0 %176
    %v179 = vmul.f32 %v172, %v177
    %v180 = vld [vmem:[%s2] sm:$0x1]
    %v182 = vperm.slane %v180, 0
    %v184 = vadd.f32 %v179, %v182
    %v185 = vand.u32 2147483647, %v184
    %vm186 = vcmp.le.f32.partialorder %v185, 0.7853982
    %vm187 = vcmp.lt.s32.totalorder %v184, 0
    %v188 = vand.u32 %v184, 2139095040
    %v189 = vshrl.u32 %v188, 23
    %v190 = vsub.s32 %v189, 127
    %v191 = vand.u32 2147483647, %v184
    %v192 = vand.u32 %v191, 8388607
    %v193 = vor.u32 %v192, 8388608
    %v194 = vsub.s32 0, %v193
    %v195 = vadd.s32 %v190, 1
    %vm196 = vcmp.gt.s32.totalorder %v195, 0
    %v197 = vsel %vm196, %v195, 0
    %v198 = vshrl.u32 %v197, 5
    %v199 = vand.u32 %v197, 31
    %v200 = vsub.s32 32, %v199
    %v201 = vshrl.u32 683565275, %v200
    %v202 = vshll.u32 683565275, %v199
    %v203 = vshrl.u32 2475754826, %v200
    %v204 = vor.u32 %v202, %v203
    %v205 = vshll.u32 2475754826, %v199
    %v206 = vshrl.u32 2131351028, %v200
    %v207 = vor.u32 %v205, %v206
    %v208 = vshll.u32 2131351028, %v199
    %v209 = vshrl.u32 2102212464, %v200
    %v210 = vor.u32 %v208, %v209
    %v211 = vshll.u32 2102212464, %v199
    %v212 = vshrl.u32 920167782, %v200
    %v213 = vor.u32 %v211, %v212
    %v214 = vshll.u32 920167782, %v199
    %v215 = vshrl.u32 1326507024, %v200
    %v216 = vor.u32 %v214, %v215
    %vm217 = vcmp.lt.s32.totalorder %v198, 1
    %vm218 = vcmp.lt.s32.totalorder %v198, 2
    %vm219 = vcmp.lt.s32.totalorder %v198, 3
    %vm220 = vcmp.lt.s32.totalorder %v198, 4
    %v221 = vsel %vm217, %v201, %v204
    %v222 = vsel %vm220, %v210, 2102212464
    %v223 = vsel %vm219, %v207, %v222
    %v224 = vsel %vm218, %v221, %v223
    %v225 = vsel %vm217, %v204, %v207
    %v226 = vsel %vm220, %v213, 920167782
    %v227 = vsel %vm219, %v210, %v226
    %v228 = vsel %vm218, %v225, %v227
    %v229 = vsel %vm217, %v207, %v210
    %v230 = vsel %vm220, %v216, 1326507024
    %v231 = vsel %vm219, %v213, %v230
    %v232 = vsel %vm218, %v229, %v231
    %v233 = vshll.u32 %v193, 8
    %v234 = vand.u32 %v233, 65535
    %v235 = vshrl.u32 %v233, 16
    %v236 = vand.u32 %v232, 65535
    %v237 = vshrl.u32 %v232, 16
    %v238 = vmul.u32 %v234, %v236
    %v239 = vmul.u32 %v234, %v237
    %v240 = vmul.u32 %v235, %v236
    %v241 = vmul.u32 %v235, %v237
    %v242 = vshll.u32 %v239, 16
    %v243 = vshrl.u32 %v239, 16
    %v244 = vshll.u32 %v240, 16
    %v245 = vshrl.u32 %v240, 16
    %vm246 = vc.u32 %v238, %v242
    %v247 = vsel %vm246, 1, 0
    %v248 = vadd.s32 %v238, %v242
    %v249 = vadd.s32 %v241, %v247
    %vm250 = vc.u32 %v248, %v244
    %v251 = vsel %vm250, 1, 0
    %v252 = vadd.s32 %v248, %v244
    %v253 = vadd.s32 %v249, %v251
    %v254 = vadd.s32 %v253, %v243
    %v255 = vadd.s32 %v254, %v245
    %v256 = vand.u32 %v233, 65535
    %v257 = vshrl.u32 %v233, 16
    %v258 = vand.u32 %v228, 65535
    %v259 = vshrl.u32 %v228, 16
    %v260 = vmul.u32 %v256, %v258
    %v261 = vmul.u32 %v256, %v259
    %v262 = vmul.u32 %v257, %v258
    %v263 = vmul.u32 %v257, %v259
    %v264 = vshll.u32 %v261, 16
    %v265 = vshrl.u32 %v261, 16
    %v266 = vshll.u32 %v262, 16
    %v267 = vshrl.u32 %v262, 16
    %vm268 = vc.u32 %v260, %v264
    %v269 = vsel %vm268, 1, 0
    %v270 = vadd.s32 %v260, %v264
    %v271 = vadd.s32 %v263, %v269
    %vm272 = vc.u32 %v270, %v266
    %v273 = vsel %vm272, 1, 0
    %v274 = vadd.s32 %v270, %v266
    %v275 = vadd.s32 %v271, %v273
    %v276 = vadd.s32 %v275, %v265
    %v277 = vadd.s32 %v276, %v267
    %v278 = vmul.u32 %v233, %v224
    %v279 = vadd.s32 %v255, %v274
    %vm280 = vc.u32 %v255, %v274
    %v281 = vadd.s32 %v277, 1
    %v282 = vsel %vm280, %v281, %v277
    %v283 = vadd.s32 %v278, %v282
    %v284 = vadd.s32 %v283, 536870912
    %v285 = vshrl.u32 %v284, 30
    %v286 = vshll.u32 %v285, 30
    %v287 = vsub.s32 %v283, %v286
    %vm288 = vcmp.lt.s32.totalorder %v287, 0
    %v289 = vsub.s32 0, %v287
    %v290 = vsel %vm288, %v289, %v287
    %v291 = vclz %v290
    %v292 = vsub.s32 %v291, 2
    %vm293 = vcmp.gt.s32.totalorder 0, %v292
    %v294 = vsel %vm293, 0, %v292
    %v295 = vsub.s32 32, %v294
    %v296 = vshll.u32 %v287, %v294
    %v297 = vshrl.u32 %v279, %v295
    %v298 = vor.u32 %v296, %v297
    %v299 = vsub.s32 4294967266, %v294
    %v300 = vadd.s32 %v299, 127
    %v301 = vshll.u32 %v300, 23
    %v302 = vor.u32 4788187, %v301
    %v303 = vand.u32 2147483647, %v302
    %v305 = vcvt.s32.f32 %v298
    %v306 = vmul.f32 %v305, %v303
    %v307 = vxor.u32 %v306, 2147483648
    %v308 = vsel %vm187, %v307, %v306
    %v309 = vsub.s32 4, %v285
    %v310 = vsel %vm187, %v309, %v285
    %v311 = vsel %vm186, %v184, %v308
    %v312 = vsel %vm186, 0, %v310
    %v313 = vmul.f32 %v311, %v311
    %v314 = vmul.f32 %v313, -0.001358992
    %v315 = vadd.f32 %v314, 0.041655596
    %v316 = vmul.f32 %v313, %v315
    %v317 = vadd.f32 %v316, -0.4999988
    %v318 = vmul.f32 %v313, %v317
    %v319 = vadd.f32 1.0, %v318
    %v320 = vmul.f32 %v311, %v311
    %v321 = vmul.f32 %v320, -0.00019511016
    %v322 = vadd.f32 %v321, 0.008332121
    %v323 = vmul.f32 %v320, %v322
    %v324 = vadd.f32 %v323, -0.16666654
    %v325 = vmul.f32 %v320, %v324
    %v326 = vadd.f32 %v325, 1.0
    %v327 = vmul.f32 %v326, %v311
    %vm328 = vweird.f32 %v184
    %v329 = vadd.s32 %v312, 3
    %v330 = vand.u32 %v329, 3
    %vm331 = vcmp.lt.s32.totalorder %v330, 2
    %vm332 = vcmp.eq.s32.totalorder %v330, 0
    %v333 = vxor.u32 %v327, 2147483648
    %v334 = vsel %vm332, %v319, %v333
    %vm335 = vcmp.eq.s32.totalorder %v330, 2
    %v336 = vxor.u32 %v319, 2147483648
    %v337 = vsel %vm335, %v336, %v327
    %v338 = vsel %vm331, %v334, %v337
    %v339 = vsel %vm328, nan, %v338
    %v340 = vand.u32 2147483647, %v184
    %vm341 = vcmp.le.f32.partialorder %v340, 0.7853982
    %vm342 = vcmp.lt.s32.totalorder %v184, 0
    %v343 = vand.u32 %v184, 2139095040
    %v344 = vshrl.u32 %v343, 23
    %v345 = vsub.s32 %v344, 127
    %v346 = vand.u32 2147483647, %v184
    %v347 = vand.u32 %v346, 8388607
    %v348 = vor.u32 %v347, 8388608
    %v349 = vsub.s32 0, %v348
    %v350 = vadd.s32 %v345, 1
    %vm351 = vcmp.gt.s32.totalorder %v350, 0
    %v352 = vsel %vm351, %v350, 0
    %v353 = vshrl.u32 %v352, 5
    %v354 = vand.u32 %v352, 31
    %v355 = vsub.s32 32, %v354
    %v356 = vshrl.u32 683565275, %v355
    %v357 = vshll.u32 683565275, %v354
    %v358 = vshrl.u32 2475754826, %v355
    %v359 = vor.u32 %v357, %v358
    %v360 = vshll.u32 2475754826, %v354
    %v361 = vshrl.u32 2131351028, %v355
    %v362 = vor.u32 %v360, %v361
    %v363 = vshll.u32 2131351028, %v354
    %v364 = vshrl.u32 2102212464, %v355
    %v365 = vor.u32 %v363, %v364
    %v366 = vshll.u32 2102212464, %v354
    %v367 = vshrl.u32 920167782, %v355
    %v368 = vor.u32 %v366, %v367
    %v369 = vshll.u32 920167782, %v354
    %v370 = vshrl.u32 1326507024, %v355
    %v371 = vor.u32 %v369, %v370
    %vm372 = vcmp.lt.s32.totalorder %v353, 1
    %vm373 = vcmp.lt.s32.totalorder %v353, 2
    %vm374 = vcmp.lt.s32.totalorder %v353, 3
    %vm375 = vcmp.lt.s32.totalorder %v353, 4
    %v376 = vsel %vm372, %v356, %v359
    %v377 = vsel %vm375, %v365, 2102212464
    %v378 = vsel %vm374, %v362, %v377
    %v379 = vsel %vm373, %v376, %v378
    %v380 = vsel %vm372, %v359, %v362
    %v381 = vsel %vm375, %v368, 920167782
    %v382 = vsel %vm374, %v365, %v381
    %v383 = vsel %vm373, %v380, %v382
    %v384 = vsel %vm372, %v362, %v365
    %v385 = vsel %vm375, %v371, 1326507024
    %v386 = vsel %vm374, %v368, %v385
    %v387 = vsel %vm373, %v384, %v386
    %v388 = vshll.u32 %v348, 8
    %v389 = vand.u32 %v388, 65535
    %v390 = vshrl.u32 %v388, 16
    %v391 = vand.u32 %v387, 65535
    %v392 = vshrl.u32 %v387, 16
    %v393 = vmul.u32 %v389, %v391
    %v394 = vmul.u32 %v389, %v392
    %v395 = vmul.u32 %v390, %v391
    %v396 = vmul.u32 %v390, %v392
    %v397 = vshll.u32 %v394, 16
    %v398 = vshrl.u32 %v394, 16
    %v399 = vshll.u32 %v395, 16
    %v400 = vshrl.u32 %v395, 16
    %vm401 = vc.u32 %v393, %v397
    %v402 = vsel %vm401, 1, 0
    %v403 = vadd.s32 %v393, %v397
    %v404 = vadd.s32 %v396, %v402
    %vm405 = vc.u32 %v403, %v399
    %v406 = vsel %vm405, 1, 0
    %v407 = vadd.s32 %v403, %v399
    %v408 = vadd.s32 %v404, %v406
    %v409 = vadd.s32 %v408, %v398
    %v410 = vadd.s32 %v409, %v400
    %v411 = vand.u32 %v388, 65535
    %v412 = vshrl.u32 %v388, 16
    %v413 = vand.u32 %v383, 65535
    %v414 = vshrl.u32 %v383, 16
    %v415 = vmul.u32 %v411, %v413
    %v416 = vmul.u32 %v411, %v414
    %v417 = vmul.u32 %v412, %v413
    %v418 = vmul.u32 %v412, %v414
    %v419 = vshll.u32 %v416, 16
    %v420 = vshrl.u32 %v416, 16
    %v421 = vshll.u32 %v417, 16
    %v422 = vshrl.u32 %v417, 16
    %vm423 = vc.u32 %v415, %v419
    %v424 = vsel %vm423, 1, 0
    %v425 = vadd.s32 %v415, %v419
    %v426 = vadd.s32 %v418, %v424
    %vm427 = vc.u32 %v425, %v421
    %v428 = vsel %vm427, 1, 0
    %v429 = vadd.s32 %v425, %v421
    %v430 = vadd.s32 %v426, %v428
    %v431 = vadd.s32 %v430, %v420
    %v432 = vadd.s32 %v431, %v422
    %v433 = vmul.u32 %v388, %v379
    %v434 = vadd.s32 %v410, %v429
    %vm435 = vc.u32 %v410, %v429
    %v436 = vadd.s32 %v432, 1
    %v437 = vsel %vm435, %v436, %v432
    %v438 = vadd.s32 %v433, %v437
    %v439 = vadd.s32 %v438, 536870912
    %v440 = vshrl.u32 %v439, 30
    %v441 = vshll.u32 %v440, 30
    %v442 = vsub.s32 %v438, %v441
    %vm443 = vcmp.lt.s32.totalorder %v442, 0
    %v444 = vsub.s32 0, %v442
    %v445 = vsel %vm443, %v444, %v442
    %v446 = vclz %v445
    %v447 = vsub.s32 %v446, 2
    %vm448 = vcmp.gt.s32.totalorder 0, %v447
    %v449 = vsel %vm448, 0, %v447
    %v450 = vsub.s32 32, %v449
    %v451 = vshll.u32 %v442, %v449
    %v452 = vshrl.u32 %v434, %v450
    %v453 = vor.u32 %v451, %v452
    %v454 = vsub.s32 4294967266, %v449
    %v455 = vadd.s32 %v454, 127
    %v456 = vshll.u32 %v455, 23
    %v457 = vor.u32 4788187, %v456
    %v458 = vand.u32 2147483647, %v457
    %v460 = vcvt.s32.f32 %v453
    %v461 = vmul.f32 %v460, %v458
    %v462 = vxor.u32 %v461, 2147483648
    %v463 = vsel %vm342, %v462, %v461
    %v464 = vsub.s32 4, %v440
    %v465 = vsel %vm342, %v464, %v440
    %v466 = vsel %vm341, %v184, %v463
    %v467 = vsel %vm341, 0, %v465
    %v468 = vmul.f32 %v466, %v466
    %v469 = vmul.f32 %v468, -0.001358992
    %v470 = vadd.f32 %v469, 0.041655596
    %v471 = vmul.f32 %v468, %v470
    %v472 = vadd.f32 %v471, -0.4999988
    %v473 = vmul.f32 %v468, %v472
    %v474 = vadd.f32 1.0, %v473
    %v475 = vmul.f32 %v466, %v466
    %v476 = vmul.f32 %v475, -0.00019511016
    %v477 = vadd.f32 %v476, 0.008332121
    %v478 = vmul.f32 %v475, %v477
    %v479 = vadd.f32 %v478, -0.16666654
    %v480 = vmul.f32 %v475, %v479
    %v481 = vadd.f32 %v480, 1.0
    %v482 = vmul.f32 %v481, %v466
    %vm483 = vweird.f32 %v184
    %v484 = vand.u32 %v467, 3
    %vm485 = vcmp.lt.s32.totalorder %v484, 2
    %vm486 = vcmp.eq.s32.totalorder %v484, 0
    %v487 = vxor.u32 %v482, 2147483648
    %v488 = vsel %vm486, %v474, %v487
    %vm489 = vcmp.eq.s32.totalorder %v484, 2
    %v490 = vxor.u32 %v474, 2147483648
    %v491 = vsel %vm489, %v490, %v482
    %v492 = vsel %vm485, %v488, %v491
    %v493 = vsel %vm483, nan, %v492
    %v494 = vld [vmem:[#allocation7] sm:$0xff]
    %v495 = vld [vmem:[#allocation7 + $0x8] sm:$0xff]
    %v496 = vld [vmem:[#allocation7 + $0x10] sm:$0xff]
    %v497 = vld [vmem:[#allocation7 + $0x18] sm:$0xff]
    %v498 = vld [vmem:[#allocation7 + $0x20] sm:$0xff]
    %v499 = vld [vmem:[#allocation7 + $0x28] sm:$0xff]
    %v500 = vld [vmem:[#allocation7 + $0x30] sm:$0xff]
    %v501 = vld [vmem:[#allocation7 + $0x38] sm:$0xff]
    %v502 = vld [vmem:[#allocation7 + $0x40] sm:$0xff]
    %v503 = vld [vmem:[#allocation7 + $0x48] sm:$0xff]
    %v504 = vld [vmem:[#allocation7 + $0x50] sm:$0xff]
    %v505 = vld [vmem:[#allocation7 + $0x58] sm:$0xff]
    %v506 = vld [vmem:[#allocation7 + $0x60] sm:$0xff]
    %v507 = vld [vmem:[#allocation7 + $0x68] sm:$0xff]
    %v508 = vld [vmem:[#allocation7 + $0x70] sm:$0xff]
    %v509 = vld [vmem:[#allocation7 + $0x78] sm:$0xff]
    %v510 = vld [vmem:[#allocation7 + $0x80] sm:$0xff]
    %v511 = vld [vmem:[#allocation7 + $0x88] sm:$0xff]
    %v512 = vld [vmem:[#allocation7 + $0x90] sm:$0xff]
    %v513 = vld [vmem:[#allocation7 + $0x98] sm:$0xff]
    %v514 = vld [vmem:[#allocation7 + $0xa0] sm:$0xff]
    %v515 = vld [vmem:[#allocation7 + $0xa8] sm:$0xff]
    %v516 = vld [vmem:[#allocation7 + $0xb0] sm:$0xff]
    %v517 = vld [vmem:[#allocation7 + $0xb8] sm:$0xff]
    %v518 = vld [vmem:[#allocation7 + $0xc0] sm:$0xff]
    %v519 = vld [vmem:[#allocation7 + $0xc8] sm:$0xff]
    %v520 = vld [vmem:[#allocation7 + $0xd0] sm:$0xff]
    %v521 = vld [vmem:[#allocation7 + $0xd8] sm:$0xff]
    %v522 = vld [vmem:[#allocation7 + $0xe0] sm:$0xff]
    %v523 = vld [vmem:[#allocation7 + $0xe8] sm:$0xff]
    %v524 = vld [vmem:[#allocation7 + $0xf0] sm:$0xff]
    %v525 = vld [vmem:[#allocation7 + $0xf8] sm:$0xff]
    %v526 = vld [vmem:[%s4] sm:$0x1]
    %v528 = vperm.slane %v526, 0
    %530 = vmatpush.msra.mxu0 %v509
    %531 = vmatpush.msra.mxu0 %v508
    %532 = vmatpush.msra.mxu0 %v507
    %533 = vmatpush.msra.mxu0 %v506
    %534 = vmatpush.msra.mxu0 %v505
    %535 = vmatpush.msra.mxu0 %v504
    %536 = vmatpush.msra.mxu0 %v503
    %537 = vmatpush.msra.mxu0 %v502
    %538 = vmatpush.msra.mxu0 %v501
    %539 = vmatpush.msra.mxu0 %v500
    %540 = vmatpush.msra.mxu0 %v499
    %541 = vmatpush.msra.mxu0 %v498
    %542 = vmatpush.msra.mxu0 %v497
    %543 = vmatpush.msra.mxu0 %v496
    %544 = vmatpush.msra.mxu0 %v495
    %545 = vmatpush.msra.mxu0 %v494
    %546 = vmatmul.f32.gmra.mxu0 %v339
    %v547 = vpop.f32.mrf.mxu0
    %v548 = vadd.f32 %v528, %v547
    %549 = vdwg.mxu0
    %550 = vmatpush.msra.mxu0 %v525
    %551 = vmatpush.msra.mxu0 %v524
    %552 = vmatpush.msra.mxu0 %v523
    %553 = vmatpush.msra.mxu0 %v522
    %554 = vmatpush.msra.mxu0 %v521
    %555 = vmatpush.msra.mxu0 %v520
    %556 = vmatpush.msra.mxu0 %v519
    %557 = vmatpush.msra.mxu0 %v518
    %558 = vmatpush.msra.mxu0 %v517
    %559 = vmatpush.msra.mxu0 %v516
    %560 = vmatpush.msra.mxu0 %v515
    %561 = vmatpush.msra.mxu0 %v514
    %562 = vmatpush.msra.mxu0 %v513
    %563 = vmatpush.msra.mxu0 %v512
    %564 = vmatpush.msra.mxu0 %v511
    %565 = vmatpush.msra.mxu0 %v510
    %566 = vmatmul.f32.gmra.mxu0 %v493
    %v567 = vpop.f32.mrf.mxu0
    %v568 = vadd.f32 %v548, %v567
    %569 = vdwg.mxu0
    %v570 = vmul.f32 %v568, 0.5
    %v571 = vmul.f32 %v568, 0.70710677
    %v572 = vmul.f32 %v571, %v571
    %v573 = vmin.f32 16.0, %v572
    %v574 = vmul.f32 %v573, 2.1237322e-06
    %v575 = vadd.f32 %v574, 0.00028619796
    %v576 = vmul.f32 %v573, %v575
    %v577 = vadd.f32 %v576, 0.0036580483
    %v578 = vmul.f32 %v573, %v577
    %v579 = vadd.f32 %v578, 0.05243302
    %v580 = vmul.f32 %v573, %v579
    %v581 = vadd.f32 %v580, 0.18741608
    %v582 = vmul.f32 %v573, %v581
    %v583 = vadd.f32 %v582, 1.1283791
    %v584 = vmul.f32 %v571, %v583
    %v585 = vmul.f32 %v573, 3.8918573e-05
    %v586 = vadd.f32 %v585, 0.001143296
    %v587 = vmul.f32 %v573, %v586
    %v588 = vadd.f32 %v587, 0.014752088
    %v589 = vmul.f32 %v573, %v588
    %v590 = vadd.f32 %v589, 0.112945676
    %v591 = vmul.f32 %v573, %v590
    %v592 = vadd.f32 %v591, 0.4994258
    %v593 = vmul.f32 %v573, %v592
    %v594 = vadd.f32 %v593, 1.0
    %v595 = vrcp.pop %v594
    %v596 = vmul.f32 %v594, %v595
    %v597 = vsub.f32 1.0, %v596
    %v598 = vmul.f32 %v595, %v597
    %v599 = vadd.f32 %v595, %v598
    %vm600 = vweird.f32 %v594
    %vm601 = vweird.f32 %v595
    %vm602 = vmor %vm600, %vm601
    %v603 = vsel %vm602, %v595, %v599
    %v604 = vand.u32 2147483647, %v594
    %vm605 = vcmp.eq.f32.partialorder %v604, 8.507059e+37
    %v606 = vand.u32 %v594, 2147483648
    %v607 = vor.u32 1.1754944e-38, %v606
    %v608 = vsel %vm605, %v607, %v603
    %v609 = vmul.f32 %v584, %v608
    %v610 = vmin.f32 %v609, 1.0
    %v611 = vmax.f32 %v610, -1.0
    %v612 = vadd.f32 %v611, 1.0
    %v613 = vmul.f32 %v570, %v612
    %v614 = vld [vmem:[#allocation8] sm:$0xff]
    %v615 = vld [vmem:[#allocation8 + $0x8] sm:$0xff]
    %v616 = vld [vmem:[#allocation8 + $0x10] sm:$0xff]
    %v617 = vld [vmem:[#allocation8 + $0x18] sm:$0xff]
    %v618 = vld [vmem:[#allocation8 + $0x20] sm:$0xff]
    %v619 = vld [vmem:[#allocation8 + $0x28] sm:$0xff]
    %v620 = vld [vmem:[#allocation8 + $0x30] sm:$0xff]
    %v621 = vld [vmem:[#allocation8 + $0x38] sm:$0xff]
    %v622 = vld [vmem:[#allocation8 + $0x40] sm:$0xff]
    %v623 = vld [vmem:[#allocation8 + $0x48] sm:$0xff]
    %v624 = vld [vmem:[#allocation8 + $0x50] sm:$0xff]
    %v625 = vld [vmem:[#allocation8 + $0x58] sm:$0xff]
    %v626 = vld [vmem:[#allocation8 + $0x60] sm:$0xff]
    %v627 = vld [vmem:[#allocation8 + $0x68] sm:$0xff]
    %v628 = vld [vmem:[#allocation8 + $0x70] sm:$0xff]
    %v629 = vld [vmem:[#allocation8 + $0x78] sm:$0xff]
    %v630 = vld [vmem:[#allocation10] sm:$0xff]
    %v631 = vld [vmem:[#allocation10 + $0x8] sm:$0xff]
    %vm632 = vcmask 130048
    %v633 = vsel %vm632, %v169, 0
    %635 = vmatpush.msra.mxu0 0.0
    %636 = vmatpush.msra.mxu0 0.0
    %637 = vmatpush.msra.mxu0 0.0
    %638 = vmatpush.msra.mxu0 0.0
    %639 = vmatpush.msra.mxu0 0.0
    %640 = vmatpush.msra.mxu0 0.0
    %641 = vmatpush.msra.mxu0 0.0
    %642 = vmatpush.msra.mxu0 0.0
    %643 = vmatpush.msra.mxu0 0.0
    %644 = vmatpush.msra.mxu0 0.0
    %645 = vmatpush.msra.mxu0 0.0
    %646 = vmatpush.msra.mxu0 0.0
    %647 = vmatpush.msra.mxu0 0.0
    %648 = vmatpush.msra.mxu0 0.0
    %649 = vmatpush.msra.mxu0 %v631
    %650 = vmatpush.msra.mxu0 %v630
    %651 = vmatmul.f32.gmra.mxu0 %v633
    %v652 = vpop.f32.mrf.mxu0
    %v653 = vadd.f32 0.0, %v652
    %654 = vdwg.mxu0
    %655 = vmatpush.msra.mxu0 %v629
    %656 = vmatpush.msra.mxu0 %v628
    %657 = vmatpush.msra.mxu0 %v627
    %658 = vmatpush.msra.mxu0 %v626
    %659 = vmatpush.msra.mxu0 %v625
    %660 = vmatpush.msra.mxu0 %v624
    %661 = vmatpush.msra.mxu0 %v623
    %662 = vmatpush.msra.mxu0 %v622
    %663 = vmatpush.msra.mxu0 %v621
    %664 = vmatpush.msra.mxu0 %v620
    %665 = vmatpush.msra.mxu0 %v619
    %666 = vmatpush.msra.mxu0 %v618
    %667 = vmatpush.msra.mxu0 %v617
    %668 = vmatpush.msra.mxu0 %v616
    %669 = vmatpush.msra.mxu0 %v615
    %670 = vmatpush.msra.mxu0 %v614
    %671 = vmatmul.f32.gmra.mxu0 %v613
    %v672 = vpop.f32.mrf.mxu0
    %v673 = vadd.f32 %v653, %v672
    %674 = vdwg.mxu0
    %v675 = vld [vmem:[%s7] sm:$0x1]
    %v677 = vperm.slane %v675, 0
    %v679 = vadd.f32 %v673, %v677
    %v680 = vmul.f32 %v679, 0.5
    %v681 = vmul.f32 %v679, 0.70710677
    %v682 = vmul.f32 %v681, %v681
    %v683 = vmin.f32 16.0, %v682
    %v684 = vmul.f32 %v683, 2.1237322e-06
    %v685 = vadd.f32 %v684, 0.00028619796
    %v686 = vmul.f32 %v683, %v685
    %v687 = vadd.f32 %v686, 0.0036580483
    %v688 = vmul.f32 %v683, %v687
    %v689 = vadd.f32 %v688, 0.05243302
    %v690 = vmul.f32 %v683, %v689
    %v691 = vadd.f32 %v690, 0.18741608
    %v692 = vmul.f32 %v683, %v691
    %v693 = vadd.f32 %v692, 1.1283791
    %v694 = vmul.f32 %v681, %v693
    %v695 = vmul.f32 %v683, 3.8918573e-05
    %v696 = vadd.f32 %v695, 0.001143296
    %v697 = vmul.f32 %v683, %v696
    %v698 = vadd.f32 %v697, 0.014752088
    %v699 = vmul.f32 %v683, %v698
    %v700 = vadd.f32 %v699, 0.112945676
    %v701 = vmul.f32 %v683, %v700
    %v702 = vadd.f32 %v701, 0.4994258
    %v703 = vmul.f32 %v683, %v702
    %v704 = vadd.f32 %v703, 1.0
    %v705 = vrcp.pop %v704
    %v706 = vmul.f32 %v704, %v705
    %v707 = vsub.f32 1.0, %v706
    %v708 = vmul.f32 %v705, %v707
    %v709 = vadd.f32 %v705, %v708
    %vm710 = vweird.f32 %v704
    %vm711 = vweird.f32 %v705
    %vm712 = vmor %vm710, %vm711
    %v713 = vsel %vm712, %v705, %v709
    %v714 = vand.u32 2147483647, %v704
    %vm715 = vcmp.eq.f32.partialorder %v714, 8.507059e+37
    %v716 = vand.u32 %v704, 2147483648
    %v717 = vor.u32 1.1754944e-38, %v716
    %v718 = vsel %vm715, %v717, %v713
    %v719 = vmul.f32 %v694, %v718
    %v720 = vmin.f32 %v719, 1.0
    %v721 = vmax.f32 %v720, -1.0
    %v722 = vadd.f32 %v721, 1.0
    %v723 = vmul.f32 %v680, %v722
    %v724 = vld [vmem:[#allocation11] sm:$0xff]
    %v725 = vld [vmem:[#allocation11 + $0x8] sm:$0xff]
    %v726 = vld [vmem:[#allocation11 + $0x10] sm:$0xff]
    %v727 = vld [vmem:[#allocation11 + $0x18] sm:$0xff]
    %v728 = vld [vmem:[#allocation11 + $0x20] sm:$0xff]
    %v729 = vld [vmem:[#allocation11 + $0x28] sm:$0xff]
    %v730 = vld [vmem:[#allocation11 + $0x30] sm:$0xff]
    %v731 = vld [vmem:[#allocation11 + $0x38] sm:$0xff]
    %v732 = vld [vmem:[#allocation11 + $0x40] sm:$0xff]
    %v733 = vld [vmem:[#allocation11 + $0x48] sm:$0xff]
    %v734 = vld [vmem:[#allocation11 + $0x50] sm:$0xff]
    %v735 = vld [vmem:[#allocation11 + $0x58] sm:$0xff]
    %v736 = vld [vmem:[#allocation11 + $0x60] sm:$0xff]
    %v737 = vld [vmem:[#allocation11 + $0x68] sm:$0xff]
    %v738 = vld [vmem:[#allocation11 + $0x70] sm:$0xff]
    %v739 = vld [vmem:[#allocation11 + $0x78] sm:$0xff]
    %v740 = vld [vmem:[%s9] sm:$0x1]
    %v742 = vperm.slane %v740, 0
    %744 = vmatpush.msra.mxu0 %v739
    %745 = vmatpush.msra.mxu0 %v738
    %746 = vmatpush.msra.mxu0 %v737
    %747 = vmatpush.msra.mxu0 %v736
    %748 = vmatpush.msra.mxu0 %v735
    %749 = vmatpush.msra.mxu0 %v734
    %750 = vmatpush.msra.mxu0 %v733
    %751 = vmatpush.msra.mxu0 %v732
    %752 = vmatpush.msra.mxu0 %v731
    %753 = vmatpush.msra.mxu0 %v730
    %754 = vmatpush.msra.mxu0 %v729
    %755 = vmatpush.msra.mxu0 %v728
    %756 = vmatpush.msra.mxu0 %v727
    %757 = vmatpush.msra.mxu0 %v726
    %758 = vmatpush.msra.mxu0 %v725
    %759 = vmatpush.msra.mxu0 %v724
    %760 = vmatmul.f32.gmra.mxu0 %v723
    %v761 = vpop.f32.mrf.mxu0
    %v762 = vadd.f32 %v742, %v761
    %763 = vdwg.mxu0
    %v764 = vmul.f32 %v762, 0.5
    %v765 = vmul.f32 %v762, 0.70710677
    %v766 = vmul.f32 %v765, %v765
    %v767 = vmin.f32 16.0, %v766
    %v768 = vmul.f32 %v767, 2.1237322e-06
    %v769 = vadd.f32 %v768, 0.00028619796
    %v770 = vmul.f32 %v767, %v769
    %v771 = vadd.f32 %v770, 0.0036580483
    %v772 = vmul.f32 %v767, %v771
    %v773 = vadd.f32 %v772, 0.05243302
    %v774 = vmul.f32 %v767, %v773
    %v775 = vadd.f32 %v774, 0.18741608
    %v776 = vmul.f32 %v767, %v775
    %v777 = vadd.f32 %v776, 1.1283791
    %v778 = vmul.f32 %v765, %v777
    %v779 = vmul.f32 %v767, 3.8918573e-05
    %v780 = vadd.f32 %v779, 0.001143296
    %v781 = vmul.f32 %v767, %v780
    %v782 = vadd.f32 %v781, 0.014752088
    %v783 = vmul.f32 %v767, %v782
    %v784 = vadd.f32 %v783, 0.112945676
    %v785 = vmul.f32 %v767, %v784
    %v786 = vadd.f32 %v785, 0.4994258
    %v787 = vmul.f32 %v767, %v786
    %v788 = vadd.f32 %v787, 1.0
    %v789 = vrcp.pop %v788
    %v790 = vmul.f32 %v788, %v789
    %v791 = vsub.f32 1.0, %v790
    %v792 = vmul.f32 %v789, %v791
    %v793 = vadd.f32 %v789, %v792
    %vm794 = vweird.f32 %v788
    %vm795 = vweird.f32 %v789
    %vm796 = vmor %vm794, %vm795
    %v797 = vsel %vm796, %v789, %v793
    %v798 = vand.u32 2147483647, %v788
    %vm799 = vcmp.eq.f32.partialorder %v798, 8.507059e+37
    %v800 = vand.u32 %v788, 2147483648
    %v801 = vor.u32 1.1754944e-38, %v800
    %v802 = vsel %vm799, %v801, %v797
    %v803 = vmul.f32 %v778, %v802
    %v804 = vmin.f32 %v803, 1.0
    %v805 = vmax.f32 %v804, -1.0
    %v806 = vadd.f32 %v805, 1.0
    %v807 = vmul.f32 %v764, %v806
    %v808 = vld [vmem:[#allocation13] sm:$0xff]
    %v809 = vld [vmem:[#allocation13 + $0x8] sm:$0xff]
    %v810 = vld [vmem:[#allocation13 + $0x10] sm:$0xff]
    %v811 = vld [vmem:[#allocation13 + $0x18] sm:$0xff]
    %v812 = vld [vmem:[#allocation13 + $0x20] sm:$0xff]
    %v813 = vld [vmem:[#allocation13 + $0x28] sm:$0xff]
    %v814 = vld [vmem:[#allocation13 + $0x30] sm:$0xff]
    %v815 = vld [vmem:[#allocation13 + $0x38] sm:$0xff]
    %v816 = vld [vmem:[#allocation13 + $0x40] sm:$0xff]
    %v817 = vld [vmem:[#allocation13 + $0x48] sm:$0xff]
    %v818 = vld [vmem:[#allocation13 + $0x50] sm:$0xff]
    %v819 = vld [vmem:[#allocation13 + $0x58] sm:$0xff]
    %v820 = vld [vmem:[#allocation13 + $0x60] sm:$0xff]
    %v821 = vld [vmem:[#allocation13 + $0x68] sm:$0xff]
    %v822 = vld [vmem:[#allocation13 + $0x70] sm:$0xff]
    %v823 = vld [vmem:[#allocation13 + $0x78] sm:$0xff]
    %v824 = vld [vmem:[%s11] sm:$0x1]
    %v826 = vperm.slane %v824, 0
    %828 = vmatpush.msra.mxu0 %v823
    %829 = vmatpush.msra.mxu0 %v822
    %830 = vmatpush.msra.mxu0 %v821
    %831 = vmatpush.msra.mxu0 %v820
    %832 = vmatpush.msra.mxu0 %v819
    %833 = vmatpush.msra.mxu0 %v818
    %834 = vmatpush.msra.mxu0 %v817
    %835 = vmatpush.msra.mxu0 %v816
    %836 = vmatpush.msra.mxu0 %v815
    %837 = vmatpush.msra.mxu0 %v814
    %838 = vmatpush.msra.mxu0 %v813
    %839 = vmatpush.msra.mxu0 %v812
    %840 = vmatpush.msra.mxu0 %v811
    %841 = vmatpush.msra.mxu0 %v810
    %842 = vmatpush.msra.mxu0 %v809
    %843 = vmatpush.msra.mxu0 %v808
    %844 = vmatmul.f32.gmra.mxu0 %v807
    %v845 = vpop.f32.mrf.mxu0
    %v846 = vadd.f32 %v826, %v845
    %847 = vdwg.mxu0
    %v848 = vmul.f32 %v846, 0.5
    %v849 = vmul.f32 %v846, 0.70710677
    %v850 = vmul.f32 %v849, %v849
    %v851 = vmin.f32 16.0, %v850
    %v852 = vmul.f32 %v851, 2.1237322e-06
    %v853 = vadd.f32 %v852, 0.00028619796
    %v854 = vmul.f32 %v851, %v853
    %v855 = vadd.f32 %v854, 0.0036580483
    %v856 = vmul.f32 %v851, %v855
    %v857 = vadd.f32 %v856, 0.05243302
    %v858 = vmul.f32 %v851, %v857
    %v859 = vadd.f32 %v858, 0.18741608
    %v860 = vmul.f32 %v851, %v859
    %v861 = vadd.f32 %v860, 1.1283791
    %v862 = vmul.f32 %v849, %v861
    %v863 = vmul.f32 %v851, 3.8918573e-05
    %v864 = vadd.f32 %v863, 0.001143296
    %v865 = vmul.f32 %v851, %v864
    %v866 = vadd.f32 %v865, 0.014752088
    %v867 = vmul.f32 %v851, %v866
    %v868 = vadd.f32 %v867, 0.112945676
    %v869 = vmul.f32 %v851, %v868
    %v870 = vadd.f32 %v869, 0.4994258
    %v871 = vmul.f32 %v851, %v870
    %v872 = vadd.f32 %v871, 1.0
    %v873 = vrcp.pop %v872
    %v874 = vmul.f32 %v872, %v873
    %v875 = vsub.f32 1.0, %v874
    %v876 = vmul.f32 %v873, %v875
    %v877 = vadd.f32 %v873, %v876
    %vm878 = vweird.f32 %v872
    %vm879 = vweird.f32 %v873
    %vm880 = vmor %vm878, %vm879
    %v881 = vsel %vm880, %v873, %v877
    %v882 = vand.u32 2147483647, %v872
    %vm883 = vcmp.eq.f32.partialorder %v882, 8.507059e+37
    %v884 = vand.u32 %v872, 2147483648
    %v885 = vor.u32 1.1754944e-38, %v884
    %v886 = vsel %vm883, %v885, %v881
    %v887 = vmul.f32 %v862, %v886
    %v888 = vmin.f32 %v887, 1.0
    %v889 = vmax.f32 %v888, -1.0
    %v890 = vadd.f32 %v889, 1.0
    %v891 = vmul.f32 %v848, %v890
    %v892 = vld [vmem:[#allocation14] sm:$0xff]
    %v893 = vld [vmem:[#allocation14 + $0x8] sm:$0xff]
    %v894 = vld [vmem:[#allocation14 + $0x10] sm:$0xff]
    %v895 = vld [vmem:[#allocation14 + $0x18] sm:$0xff]
    %v896 = vld [vmem:[#allocation14 + $0x20] sm:$0xff]
    %v897 = vld [vmem:[#allocation14 + $0x28] sm:$0xff]
    %v898 = vld [vmem:[#allocation14 + $0x30] sm:$0xff]
    %v899 = vld [vmem:[#allocation14 + $0x38] sm:$0xff]
    %v900 = vld [vmem:[#allocation14 + $0x40] sm:$0xff]
    %v901 = vld [vmem:[#allocation14 + $0x48] sm:$0xff]
    %v902 = vld [vmem:[#allocation14 + $0x50] sm:$0xff]
    %v903 = vld [vmem:[#allocation14 + $0x58] sm:$0xff]
    %v904 = vld [vmem:[#allocation14 + $0x60] sm:$0xff]
    %v905 = vld [vmem:[#allocation14 + $0x68] sm:$0xff]
    %v906 = vld [vmem:[#allocation14 + $0x70] sm:$0xff]
    %v907 = vld [vmem:[#allocation14 + $0x78] sm:$0xff]
    %v908 = vld [vmem:[%s13] sm:$0x1]
    %v910 = vperm.slane %v908, 0
    %912 = vmatpush.msra.mxu0 %v907
    %913 = vmatpush.msra.mxu0 %v906
    %914 = vmatpush.msra.mxu0 %v905
    %915 = vmatpush.msra.mxu0 %v904
    %916 = vmatpush.msra.mxu0 %v903
    %917 = vmatpush.msra.mxu0 %v902
    %918 = vmatpush.msra.mxu0 %v901
    %919 = vmatpush.msra.mxu0 %v900
    %920 = vmatpush.msra.mxu0 %v899
    %921 = vmatpush.msra.mxu0 %v898
    %922 = vmatpush.msra.mxu0 %v897
    %923 = vmatpush.msra.mxu0 %v896
    %924 = vmatpush.msra.mxu0 %v895
    %925 = vmatpush.msra.mxu0 %v894
    %926 = vmatpush.msra.mxu0 %v893
    %927 = vmatpush.msra.mxu0 %v892
    %928 = vmatmul.f32.gmra.mxu0 %v891
    %v929 = vpop.f32.mrf.mxu0
    %v930 = vadd.f32 %v910, %v929
    %931 = vdwg.mxu0
    %932 = vst [vmem:[#allocation16] sm:$0xff] %v930
    // Predicated region
    $region90: #{tpu_custom_call.1} parent=1 // pred_check
      _
    $region91: #{tpu_custom_call.1} parent=1 // pred_check_branch
      %934 = sbr.rel (0) target = $region93
    $region92: #{tpu_custom_call.1} parent=1 // pred_region
      %936 = vsyncadd [#allocation4], 0
      %s938 = sshll.u32 [#allocation16], 4
      %s939 = int_to_ptr.vmem [resolvable:$true] %s938
      %s940 = sshll.u32 %s14, 4
      %s941 = int_to_ptr.hbm [resolvable:$true] %s940
      %943 = dma.vmem_to_hbm [thread:$0]  %s939, 128, %s941, [#allocation4]
    $region93: #{tpu_custom_call.1} parent=1 // pred_fallthru
      _
    // Predicated region
    $region94: #{tpu_custom_call.1} parent=1 // pred_check
      _
    $region95: #{tpu_custom_call.1} parent=1 // pred_check_branch
      %945 = sbr.rel (0) target = $region97
    $region96: #{tpu_custom_call.1} parent=1 // pred_region
      %947 = dma.done [#allocation4], 128
    $region97: #{tpu_custom_call.1} parent=1 // pred_fallthru
      _
    %948 = vsyncpa [#allocation3], 1
    %949 = vsyncpa [#allocation6], 1
    %950 = vsyncpa [#allocation9], 1
    %951 = vsyncpa [#allocation12], 1
    %952 = vsyncpa [#allocation15], 1
    %953 = vsyncpa [#allocation4], 1

</llo_original>
